<compile_context>
chip_gen: v6e
topology: v6e:2x2x1
jax: 0.10.0
libtpu: 0.0.40
codegen_flags: <defaults>
</compile_context>

<pallas_src>
import jax
import jax.numpy as jnp
from jax.experimental import pallas as pl
from jax.experimental.pallas import tpu as pltpu

_SUBLANE = 8
_TARGET_TILE_M = 1024


def _round_up(x, m):
    return (x + m - 1) // m * m


# ----------------------------- Pallas kernel -------------------------------
def _mlp_decoder_kernel(x_ref, w1_ref, b1_ref, w2_ref, b2_ref, o_ref):
    # Fused: out = relu(x @ W1 + b1) @ W2 + b2
    # x is f32 in HBM (read once, cast here); W1/W2 are bf16 (MXU-native);
    # accumulation + bias + ReLU in f32.
    x = x_ref[...].astype(jnp.bfloat16)                          # (tm, d_in)
    h = jnp.dot(x, w1_ref[...], preferred_element_type=jnp.float32)
    h = jnp.maximum(h + b1_ref[...], 0.0)                        # f32 bias + ReLU (VPU)
    y = jnp.dot(h.astype(jnp.bfloat16), w2_ref[...],
                preferred_element_type=jnp.float32)
    o_ref[...] = (y + b2_ref[...]).astype(o_ref.dtype)


def _choose_tile_m(n):
    """Row tile: the whole batch if it fits one tile, else 1024 rows per step.
    Ragged tails are masked by Pallas (pl.cdiv grid) — no row padding needed."""
    if n <= _TARGET_TILE_M:
        return n                       # full-extent block, grid = 1
    return _TARGET_TILE_M              # divisible by 8; last block masked


def _mlp_decoder_pallas(x, w1, b1, w2, b2):
    """x: [N, d_in] f32 -> [N, d_out] f32.  Weights bf16, biases f32 (unpadded)."""
    n, d_in = x.shape
    hidden = w1.shape[1]
    d_out = w2.shape[1]

    tile_m = _choose_tile_m(n)
    grid = (pl.cdiv(n, tile_m),)

    return pl.pallas_call(
        _mlp_decoder_kernel,
        out_shape=jax.ShapeDtypeStruct((n, d_out), jnp.float32),
        grid_spec=pltpu.PrefetchScalarGridSpec(
            num_scalar_prefetch=0,
            grid=grid,
            in_specs=[
                pl.BlockSpec((tile_m, d_in), lambda i: (i, 0)),   # x tile (streamed, f32)
                pl.BlockSpec((d_in, hidden), lambda i: (0, 0)),   # W1 (resident, bf16)
                pl.BlockSpec((1, hidden), lambda i: (0, 0)),      # b1 (f32)
                pl.BlockSpec((hidden, d_out), lambda i: (0, 0)),  # W2 (resident, bf16)
                pl.BlockSpec((1, d_out), lambda i: (0, 0)),       # b2 (f32)
            ],
            out_specs=pl.BlockSpec((tile_m, d_out), lambda i: (i, 0)),
        ),
        compiler_params=pltpu.CompilerParams(
            dimension_semantics=("parallel",),
        ),
    )(x, w1, b1, w2, b2)


# Single jit over the whole decoder path (kernel is ~µs at small N, so dispatch
# overhead and any surrounding memory ops must be fused).
mlp_decoder = jax.jit(_mlp_decoder_pallas)


# ------------------------- synthetic inner model ---------------------------
class SpectraDecoderModel:
    """Synthetic stand-in for the model wrapped by AstroPipeline."""

    def __init__(self, d_in=32, hidden=64, d_out=32, seed=0):
        k1, k2 = jax.random.split(jax.random.PRNGKey(seed))
        scale1 = 1.0 / jnp.sqrt(jnp.float32(d_in))
        scale2 = 1.0 / jnp.sqrt(jnp.float32(hidden))
        # canonical f32 parameters (unpadded)
        self.w1 = jax.random.normal(k1, (d_in, hidden), jnp.float32) * scale1
        self.b1 = jnp.zeros((1, hidden), jnp.float32)
        self.w2 = jax.random.normal(k2, (hidden, d_out), jnp.float32) * scale2
        self.b2 = jnp.zeros((1, d_out), jnp.float32)
        self.d_in, self.hidden, self.d_out = d_in, hidden, d_out
        self.latents = None

        # MXU operands cast to bf16 ONCE here (no lane padding — real widths,
        # full-extent blocks; the kernel is HBM-bound, padding only adds bytes).
        self.w1_bf16 = self.w1.astype(jnp.bfloat16)
        self.w2_bf16 = self.w2.astype(jnp.bfloat16)

    # state-setting hooks mirrored by AstroPipeline
    def set_latents(self, latents):
        self.latents = latents

    def get_addup_latents(self):
        return self.latents

    def __call__(self, x):
        return mlp_decoder(x, self.w1_bf16, self.b1, self.w2_bf16, self.b2)


# ------------------------------ AstroPipeline ------------------------------
class AstroPipeline:
    """JAX port of wisp's AstroPipeline: pure delegation to the inner model."""

    def __init__(self, model):
        self.model = model

    def get_addup_latents(self):
        return self.model.get_addup_latents()

    def set_latents(self, latents):
        self.model.set_latents(latents)

    # TODO(synk): remaining setters (set_base_latents, set_gt_bin_latents,
    # set_wrong_bin_latents, set_redshift_latents, set_batch_reduction_order,
    # set_bayesian_redshift_logits_calculation, toggle_sample_bins,
    # add_latents, combine_latents_all_bins) are stateful bookkeeping on the
    # inner model with no compute; omitted in the synthetic inner model.

    def forward(self, *args, **kwargs):
        return self.model(*args, **kwargs)

    __call__ = forward


# ---------------------------------- main -----------------------------------
if __name__ == "__main__":
    N, D_IN, HIDDEN, D_OUT = 256, 32, 64, 32

    key = jax.random.PRNGKey(0)
    x = jax.random.normal(key, (N, D_IN), jnp.float32)

    model = SpectraDecoderModel(d_in=D_IN, hidden=HIDDEN, d_out=D_OUT, seed=0)
    pipeline = AstroPipeline(model)
    pipeline.set_latents(x)

    out = pipeline(x)
    out = jax.block_until_ready(out)
    assert out.shape == (N, D_OUT)
    assert out.dtype == jnp.float32

    # reference with identical bf16-operand / f32-accumulation semantics
    xb = x.astype(jnp.bfloat16)
    h_ref = jnp.maximum(
        jnp.dot(xb, model.w1_bf16, preferred_element_type=jnp.float32) + model.b1,
        0.0)
    ref_bf16 = jnp.dot(h_ref.astype(jnp.bfloat16), model.w2_bf16,
                       preferred_element_type=jnp.float32) + model.b2
    assert jnp.allclose(out, ref_bf16, atol=1e-3, rtol=1e-3)

    # sanity vs. full-f32 math (loose, bf16 operand rounding)
    ref_f32 = jnp.maximum(x @ model.w1 + model.b1, 0.0) @ model.w2 + model.b2
    assert jnp.allclose(out, ref_f32, atol=5e-2, rtol=5e-2)

    # also exercise a batch size that is not a multiple of 8 (full-extent block)
    x_small = jax.random.normal(jax.random.PRNGKey(1), (200, D_IN), jnp.float32)
    out_small = jax.block_until_ready(pipeline(x_small))
    assert out_small.shape == (200, D_OUT)

    print("KERNEL_OK")
</pallas_src>

<mosaic_0001>
module attributes {stable_mosaic.version = 11 : i64} {
  func.func @_mlp_decoder_kernel(%arg0: i32, %arg1: memref<256x32xf32, #tpu.memory_space<vmem>>, %arg2: memref<32x64xbf16, #tpu.memory_space<vmem>>, %arg3: memref<1x64xf32, #tpu.memory_space<vmem>>, %arg4: memref<64x32xbf16, #tpu.memory_space<vmem>>, %arg5: memref<1x32xf32, #tpu.memory_space<vmem>>, %arg6: memref<256x32xf32, #tpu.memory_space<vmem>>) attributes {dimension_semantics = [#tpu.dimension_semantics<parallel>], iteration_bounds = array<i64: 1>, scalar_prefetch = 0 : i64, scratch_operands = 0 : i64, tpu.core_type = #tpu.core_type<tc>, window_params = [{transform_indices = @transform_0, window_bounds = array<i64: 256, 32>}, {pipeline_mode = #tpu.pipeline_mode<synchronous>, transform_indices = @transform_1, window_bounds = array<i64: 32, 64>}, {pipeline_mode = #tpu.pipeline_mode<synchronous>, transform_indices = @transform_2, window_bounds = array<i64: 1, 64>}, {pipeline_mode = #tpu.pipeline_mode<synchronous>, transform_indices = @transform_3, window_bounds = array<i64: 64, 32>}, {pipeline_mode = #tpu.pipeline_mode<synchronous>, transform_indices = @transform_4, window_bounds = array<i64: 1, 32>}, {transform_indices = @transform_5, window_bounds = array<i64: 256, 32>}]} {
    %c0 = arith.constant 0 : index
    %c0_0 = arith.constant 0 : index
    %0 = vector.load %arg1[%c0, %c0_0] : memref<256x32xf32, #tpu.memory_space<vmem>>, vector<256x32xf32>
    %1 = arith.truncf %0 : vector<256x32xf32> to vector<256x32xbf16>
    %c0_1 = arith.constant 0 : index
    %c0_2 = arith.constant 0 : index
    %2 = vector.load %arg2[%c0_1, %c0_2] : memref<32x64xbf16, #tpu.memory_space<vmem>>, vector<32x64xbf16>
    %cst = arith.constant dense<0.000000e+00> : vector<256x64xf32>
    %3 = tpu.matmul %1, %2, %cst {dimension_numbers = #tpu.dot_dimension_numbers<[1], [0], [0], [1], [0, 0, 1, 1], [], []>} : vector<256x32xbf16>, vector<32x64xbf16>, vector<256x64xf32> -> vector<256x64xf32>
    %c0_3 = arith.constant 0 : index
    %c0_4 = arith.constant 0 : index
    %4 = vector.load %arg3[%c0_3, %c0_4] : memref<1x64xf32, #tpu.memory_space<vmem>>, vector<1x64xf32>
    %5 = vector.broadcast %4 : vector<1x64xf32> to vector<256x64xf32>
    %6 = arith.addf %3, %5 : vector<256x64xf32>
    %cst_5 = arith.constant 0.000000e+00 : f32
    %7 = vector.broadcast %cst_5 : f32 to vector<256x64xf32>
    %8 = arith.maximumf %6, %7 : vector<256x64xf32>
    %9 = arith.truncf %8 : vector<256x64xf32> to vector<256x64xbf16>
    %c0_6 = arith.constant 0 : index
    %c0_7 = arith.constant 0 : index
    %10 = vector.load %arg4[%c0_6, %c0_7] : memref<64x32xbf16, #tpu.memory_space<vmem>>, vector<64x32xbf16>
    %cst_8 = arith.constant dense<0.000000e+00> : vector<256x32xf32>
    %11 = tpu.matmul %9, %10, %cst_8 {dimension_numbers = #tpu.dot_dimension_numbers<[1], [0], [0], [1], [0, 0, 1, 1], [], []>} : vector<256x64xbf16>, vector<64x32xbf16>, vector<256x32xf32> -> vector<256x32xf32>
    %c0_9 = arith.constant 0 : index
    %c0_10 = arith.constant 0 : index
    %12 = vector.load %arg5[%c0_9, %c0_10] : memref<1x32xf32, #tpu.memory_space<vmem>>, vector<1x32xf32>
    %13 = vector.broadcast %12 : vector<1x32xf32> to vector<256x32xf32>
    %14 = arith.addf %11, %13 : vector<256x32xf32>
    %c0_11 = arith.constant 0 : index
    %c0_12 = arith.constant 0 : index
    %15 = vector.load %arg6[%c0_11, %c0_12] : memref<256x32xf32, #tpu.memory_space<vmem>>, vector<256x32xf32>
    tpu.vector_store %arg6[%c0_11, %c0_12], %14 {strides = array<i32>} : memref<256x32xf32, #tpu.memory_space<vmem>>, vector<256x32xf32>,
    return
  }
  func.func @transform_0(%arg0: i32) -> (i32, i32) {
    %c0_i32 = arith.constant 0 : i32
    %c0_i32_0 = arith.constant 0 : i32
    return %arg0, %c0_i32 : i32, i32
  }
  func.func @transform_1(%arg0: i32) -> (i32, i32) {
    %c0_i32 = arith.constant 0 : i32
    %c0_i32_0 = arith.constant 0 : i32
    %c0_i32_1 = arith.constant 0 : i32
    return %c0_i32, %c0_i32_0 : i32, i32
  }
  func.func @transform_2(%arg0: i32) -> (i32, i32) {
    %c0_i32 = arith.constant 0 : i32
    %c0_i32_0 = arith.constant 0 : i32
    %c0_i32_1 = arith.constant 0 : i32
    return %c0_i32, %c0_i32_0 : i32, i32
  }
  func.func @transform_3(%arg0: i32) -> (i32, i32) {
    %c0_i32 = arith.constant 0 : i32
    %c0_i32_0 = arith.constant 0 : i32
    %c0_i32_1 = arith.constant 0 : i32
    return %c0_i32, %c0_i32_0 : i32, i32
  }
  func.func @transform_4(%arg0: i32) -> (i32, i32) {
    %c0_i32 = arith.constant 0 : i32
    %c0_i32_0 = arith.constant 0 : i32
    %c0_i32_1 = arith.constant 0 : i32
    return %c0_i32, %c0_i32_0 : i32, i32
  }
  func.func @transform_5(%arg0: i32) -> (i32, i32) {
    %c0_i32 = arith.constant 0 : i32
    %c0_i32_0 = arith.constant 0 : i32
    return %arg0, %c0_i32 : i32, i32
  }
}

</mosaic_0001>

<llo_original>
// kernel: _mlp_decoder_pallas.1
$region0: #{_mlp_decoder_pallas.1}
  #allocation0 [shape = 'u32[]', space=smem, size = 0x4, offset = 0x4, fixed_abs, tag = 'smem constant byte address 0x4 - core index']
  #allocation1 [shape = 'u32[144,128]{1,0:T(1,128)}', space=vmem, size = 0x12000, scoped, tag = 'internal scratch']
  %s0 = inlined_call_operand.vmem [shape: f32[256,32], index: 0, kind: input, shape index: {}]
  %s1 = inlined_call_operand.vmem [shape: bf16[32,64], index: 1, kind: input, shape index: {}]
  %s2 = inlined_call_operand.vmem [shape: f32[1,64], index: 2, kind: input, shape index: {}]
  %s3 = inlined_call_operand.vmem [shape: bf16[64,32], index: 3, kind: input, shape index: {}]
  %s4 = inlined_call_operand.vmem [shape: f32[1,32], index: 4, kind: input, shape index: {}]
  %s5 = inlined_call_operand.vmem [shape: f32[256,32], index: 5, kind: output, shape index: {}]
  %s6 = sld [smem:[#allocation0]]
  $region30: #{_mlp_decoder_pallas.1} parent=0
    _
  %s8 = ssub.s32 1, %s6
  %s9 = scalar_select 0, %s8, %s6
  // Predicated region
  $region2: #{_mlp_decoder_pallas.1} parent=0 // pred_check
    _
  $region3: #{_mlp_decoder_pallas.1} parent=0 // pred_check_branch
    %11 = sbr.rel (0) target = $region5
  $region4: #{_mlp_decoder_pallas.1} parent=0 // pred_region
    _
  $region5: #{_mlp_decoder_pallas.1} parent=0 // pred_fallthru
    _
  // Predicated region
  $region6: #{_mlp_decoder_pallas.1} parent=0 // pred_check
    _
  $region7: #{_mlp_decoder_pallas.1} parent=0 // pred_check_branch
    %13 = sbr.rel (0) target = $region9
  $region8: #{_mlp_decoder_pallas.1} parent=0 // pred_region
    _
  $region9: #{_mlp_decoder_pallas.1} parent=0 // pred_fallthru
    _
  // Predicated region
  $region10: #{_mlp_decoder_pallas.1} parent=0 // pred_check
    _
  $region11: #{_mlp_decoder_pallas.1} parent=0 // pred_check_branch
    %15 = sbr.rel (0) target = $region13
  $region12: #{_mlp_decoder_pallas.1} parent=0 // pred_region
    _
  $region13: #{_mlp_decoder_pallas.1} parent=0 // pred_fallthru
    _
  // Predicated region
  $region14: #{_mlp_decoder_pallas.1} parent=0 // pred_check
    _
  $region15: #{_mlp_decoder_pallas.1} parent=0 // pred_check_branch
    %17 = sbr.rel (0) target = $region17
  $region16: #{_mlp_decoder_pallas.1} parent=0 // pred_region
    _
  $region17: #{_mlp_decoder_pallas.1} parent=0 // pred_fallthru
    _
  // Predicated region
  $region18: #{_mlp_decoder_pallas.1} parent=0 // pred_check
    _
  $region19: #{_mlp_decoder_pallas.1} parent=0 // pred_check_branch
    %19 = sbr.rel (0) target = $region21
  $region20: #{_mlp_decoder_pallas.1} parent=0 // pred_region
    _
  $region21: #{_mlp_decoder_pallas.1} parent=0 // pred_fallthru
    _
  %v21 = vld [vmem:[%s0] sm:$0xff]
  %v22 = vld [vmem:[%s0 + $0x8] sm:$0xff]
  %v23 = vld [vmem:[%s0 + $0x10] sm:$0xff]
  %v24 = vld [vmem:[%s0 + $0x18] sm:$0xff]
  %v25 = vld [vmem:[%s0 + $0x20] sm:$0xff]
  %v26 = vld [vmem:[%s0 + $0x28] sm:$0xff]
  %v27 = vld [vmem:[%s0 + $0x30] sm:$0xff]
  %v28 = vld [vmem:[%s0 + $0x38] sm:$0xff]
  %v29 = vld [vmem:[%s0 + $0x40] sm:$0xff]
  %v30 = vld [vmem:[%s0 + $0x48] sm:$0xff]
  %v31 = vld [vmem:[%s0 + $0x50] sm:$0xff]
  %v32 = vld [vmem:[%s0 + $0x58] sm:$0xff]
  %v33 = vld [vmem:[%s0 + $0x60] sm:$0xff]
  %v34 = vld [vmem:[%s0 + $0x68] sm:$0xff]
  %v35 = vld [vmem:[%s0 + $0x70] sm:$0xff]
  %v36 = vld [vmem:[%s0 + $0x78] sm:$0xff]
  %v37 = vld [vmem:[%s0 + $0x80] sm:$0xff]
  %v38 = vld [vmem:[%s0 + $0x88] sm:$0xff]
  %v39 = vld [vmem:[%s0 + $0x90] sm:$0xff]
  %v40 = vld [vmem:[%s0 + $0x98] sm:$0xff]
  %v41 = vld [vmem:[%s0 + $0xa0] sm:$0xff]
  %v42 = vld [vmem:[%s0 + $0xa8] sm:$0xff]
  %v43 = vld [vmem:[%s0 + $0xb0] sm:$0xff]
  %v44 = vld [vmem:[%s0 + $0xb8] sm:$0xff]
  %v45 = vld [vmem:[%s0 + $0xc0] sm:$0xff]
  %v46 = vld [vmem:[%s0 + $0xc8] sm:$0xff]
  %v47 = vld [vmem:[%s0 + $0xd0] sm:$0xff]
  %v48 = vld [vmem:[%s0 + $0xd8] sm:$0xff]
  %v49 = vld [vmem:[%s0 + $0xe0] sm:$0xff]
  %v50 = vld [vmem:[%s0 + $0xe8] sm:$0xff]
  %v51 = vld [vmem:[%s0 + $0xf0] sm:$0xff]
  %v52 = vld [vmem:[%s0 + $0xf8] sm:$0xff]
  %v53 = vpack.c.bf16 %v22, %v21
  %v54 = vpack.c.bf16 %v24, %v23
  %v55 = vpack.c.bf16 %v26, %v25
  %v56 = vpack.c.bf16 %v28, %v27
  %v57 = vpack.c.bf16 %v30, %v29
  %v58 = vpack.c.bf16 %v32, %v31
  %v59 = vpack.c.bf16 %v34, %v33
  %v60 = vpack.c.bf16 %v36, %v35
  %v61 = vpack.c.bf16 %v38, %v37
  %v62 = vpack.c.bf16 %v40, %v39
  %v63 = vpack.c.bf16 %v42, %v41
  %v64 = vpack.c.bf16 %v44, %v43
  %v65 = vpack.c.bf16 %v46, %v45
  %v66 = vpack.c.bf16 %v48, %v47
  %v67 = vpack.c.bf16 %v50, %v49
  %v68 = vpack.c.bf16 %v52, %v51
  %v69 = vld [vmem:[%s1] sm:$0xf]
  %v70 = vld [vmem:[%s1 + $0x4] sm:$0xf]
  %v71 = vld [vmem:[%s1 + $0x8] sm:$0xf]
  %v72 = vld [vmem:[%s1 + $0xc] sm:$0xf]
  %v73 = vld [vmem:[%s2] sm:$0x1]
  %v75 = vlaneseq
  %v76 = vshrl.u32 %v75, 7
  %v77 = vsub.s32 0, %v76
  %v78 = vrot.slane %v73, %v77
  %v84 = vunpack.c.l.b16 %v69
  %v85 = vunpack.c.l.b16 %v70
  %v86 = vunpack.c.l.b16 %v71
  %v87 = vunpack.c.l.b16 %v72
  %v88 = vpack.c.b16 %v85, %v84
  %v89 = vpack.c.b16 %v87, %v86
  %vm92 = vcmask 261120
  %v94 = vsel %vm92, %v53, 0
  %v97 = vsel %vm92, %v54, 0
  %v100 = vsel %vm92, %v55, 0
  %v103 = vsel %vm92, %v56, 0
  %v106 = vsel %vm92, %v57, 0
  %v109 = vsel %vm92, %v58, 0
  %v112 = vsel %vm92, %v59, 0
  %v115 = vsel %vm92, %v60, 0
  %v118 = vsel %vm92, %v61, 0
  %v121 = vsel %vm92, %v62, 0
  %v124 = vsel %vm92, %v63, 0
  %v127 = vsel %vm92, %v64, 0
  %v130 = vsel %vm92, %v65, 0
  %v133 = vsel %vm92, %v66, 0
  %v136 = vsel %vm92, %v67, 0
  %v139 = vsel %vm92, %v68, 0
  %141 = vmatprep.subr.bf16.mxu0 0
  %142 = vmatpush1.bf16.msra.mxu0 0
  %143 = vmatprep.subr.bf16.mxu0 0
  %144 = vmatpush1.bf16.msra.mxu0 0
  %145 = vmatprep.subr.bf16.mxu0 0
  %146 = vmatpush1.bf16.msra.mxu0 0
  %147 = vmatprep.subr.bf16.mxu0 0
  %148 = vmatpush1.bf16.msra.mxu0 0
  %149 = vmatprep.subr.bf16.mxu0 0
  %150 = vmatpush1.bf16.msra.mxu0 0
  %151 = vmatprep.subr.bf16.mxu0 0
  %152 = vmatpush1.bf16.msra.mxu0 0
  %153 = vmatprep.subr.bf16.mxu0 0
  %154 = vmatpush1.bf16.msra.mxu0 %v89
  %155 = vmatprep.subr.bf16.mxu0 0
  %156 = vmatpush1.bf16.msra.mxu0 %v88
  %157 = vmatprep.subr.bf16.mxu0 0
  %158 = vmatpush2.bf16.msra.mxu0 0
  %159 = vmatprep.subr.bf16.mxu0 0
  %160 = vmatpush2.bf16.msra.mxu0 0
  %161 = vmatprep.subr.bf16.mxu0 0
  %162 = vmatpush2.bf16.msra.mxu0 0
  %163 = vmatprep.subr.bf16.mxu0 0
  %164 = vmatpush2.bf16.msra.mxu0 0
  %165 = vmatprep.subr.bf16.mxu0 0
  %166 = vmatpush2.bf16.msra.mxu0 0
  %167 = vmatprep.subr.bf16.mxu0 0
  %168 = vmatpush2.bf16.msra.mxu0 0
  %169 = vmatprep.subr.bf16.mxu0 0
  %170 = vmatpush2.bf16.msra.mxu0 0
  %171 = vmatprep.subr.bf16.mxu0 0
  %172 = vmatpush2.bf16.msra.mxu0 0
  %173 = vmatprep.mubr.bf16.mxu0 0
  %174 = vmatmul.mubr.bf16.gmra.mxu0 %v94
  %v175 = vpop.f32.mrf.mxu0
  %v176 = vadd.f32 %v78, %v175
  %v177 = vpop.f32.mrf.mxu0
  %v178 = vpop.f32.mrf.mxu0
  %v179 = vadd.f32 %v78, %v178
  %v180 = vpop.f32.mrf.mxu0
  %181 = vmatprep.mubr.bf16.mxu0 0
  %182 = vmatmul.mubr.bf16.gmra.mxu0 %v97
  %v183 = vpop.f32.mrf.mxu0
  %v184 = vadd.f32 %v78, %v183
  %v185 = vpop.f32.mrf.mxu0
  %v186 = vpop.f32.mrf.mxu0
  %v187 = vadd.f32 %v78, %v186
  %v188 = vpop.f32.mrf.mxu0
  %189 = vmatprep.mubr.bf16.mxu0 0
  %190 = vmatmul.mubr.bf16.gmra.mxu0 %v100
  %v191 = vpop.f32.mrf.mxu0
  %v192 = vadd.f32 %v78, %v191
  %v193 = vpop.f32.mrf.mxu0
  %v194 = vpop.f32.mrf.mxu0
  %v195 = vadd.f32 %v78, %v194
  %v196 = vpop.f32.mrf.mxu0
  %197 = vmatprep.mubr.bf16.mxu0 0
  %198 = vmatmul.mubr.bf16.gmra.mxu0 %v103
  %v199 = vpop.f32.mrf.mxu0
  %v200 = vadd.f32 %v78, %v199
  %v201 = vpop.f32.mrf.mxu0
  %v202 = vpop.f32.mrf.mxu0
  %v203 = vadd.f32 %v78, %v202
  %v204 = vpop.f32.mrf.mxu0
  %205 = vmatprep.mubr.bf16.mxu0 0
  %206 = vmatmul.mubr.bf16.gmra.mxu0 %v106
  %v207 = vpop.f32.mrf.mxu0
  %v208 = vadd.f32 %v78, %v207
  %v209 = vpop.f32.mrf.mxu0
  %v210 = vpop.f32.mrf.mxu0
  %v211 = vadd.f32 %v78, %v210
  %v212 = vpop.f32.mrf.mxu0
  %213 = vmatprep.mubr.bf16.mxu0 0
  %214 = vmatmul.mubr.bf16.gmra.mxu0 %v109
  %v215 = vpop.f32.mrf.mxu0
  %v216 = vadd.f32 %v78, %v215
  %v217 = vpop.f32.mrf.mxu0
  %v218 = vpop.f32.mrf.mxu0
  %v219 = vadd.f32 %v78, %v218
  %v220 = vpop.f32.mrf.mxu0
  %221 = vmatprep.mubr.bf16.mxu0 0
  %222 = vmatmul.mubr.bf16.gmra.mxu0 %v112
  %v223 = vpop.f32.mrf.mxu0
  %v224 = vadd.f32 %v78, %v223
  %v225 = vpop.f32.mrf.mxu0
  %v226 = vpop.f32.mrf.mxu0
  %v227 = vadd.f32 %v78, %v226
  %v228 = vpop.f32.mrf.mxu0
  %229 = vmatprep.mubr.bf16.mxu0 0
  %230 = vmatmul.mubr.bf16.gmra.mxu0 %v115
  %v231 = vpop.f32.mrf.mxu0
  %v232 = vadd.f32 %v78, %v231
  %v233 = vpop.f32.mrf.mxu0
  %v234 = vpop.f32.mrf.mxu0
  %v235 = vadd.f32 %v78, %v234
  %v236 = vpop.f32.mrf.mxu0
  %237 = vmatprep.mubr.bf16.mxu0 0
  %238 = vmatmul.mubr.bf16.gmra.mxu0 %v118
  %v239 = vpop.f32.mrf.mxu0
  %v240 = vadd.f32 %v78, %v239
  %v241 = vpop.f32.mrf.mxu0
  %v242 = vpop.f32.mrf.mxu0
  %v243 = vadd.f32 %v78, %v242
  %v244 = vpop.f32.mrf.mxu0
  %245 = vmatprep.mubr.bf16.mxu0 0
  %246 = vmatmul.mubr.bf16.gmra.mxu0 %v121
  %v247 = vpop.f32.mrf.mxu0
  %v248 = vadd.f32 %v78, %v247
  %v249 = vpop.f32.mrf.mxu0
  %v250 = vpop.f32.mrf.mxu0
  %v251 = vadd.f32 %v78, %v250
  %v252 = vpop.f32.mrf.mxu0
  %253 = vmatprep.mubr.bf16.mxu0 0
  %254 = vmatmul.mubr.bf16.gmra.mxu0 %v124
  %v255 = vpop.f32.mrf.mxu0
  %v256 = vadd.f32 %v78, %v255
  %v257 = vpop.f32.mrf.mxu0
  %v258 = vpop.f32.mrf.mxu0
  %v259 = vadd.f32 %v78, %v258
  %v260 = vpop.f32.mrf.mxu0
  %261 = vmatprep.mubr.bf16.mxu0 0
  %262 = vmatmul.mubr.bf16.gmra.mxu0 %v127
  %v263 = vpop.f32.mrf.mxu0
  %v264 = vadd.f32 %v78, %v263
  %v265 = vpop.f32.mrf.mxu0
  %v266 = vpop.f32.mrf.mxu0
  %v267 = vadd.f32 %v78, %v266
  %v268 = vpop.f32.mrf.mxu0
  %269 = vmatprep.mubr.bf16.mxu0 0
  %270 = vmatmul.mubr.bf16.gmra.mxu0 %v130
  %v271 = vpop.f32.mrf.mxu0
  %v272 = vadd.f32 %v78, %v271
  %v273 = vpop.f32.mrf.mxu0
  %v274 = vpop.f32.mrf.mxu0
  %v275 = vadd.f32 %v78, %v274
  %v276 = vpop.f32.mrf.mxu0
  %277 = vmatprep.mubr.bf16.mxu0 0
  %278 = vmatmul.mubr.bf16.gmra.mxu0 %v133
  %v279 = vpop.f32.mrf.mxu0
  %v280 = vadd.f32 %v78, %v279
  %v281 = vpop.f32.mrf.mxu0
  %v282 = vpop.f32.mrf.mxu0
  %v283 = vadd.f32 %v78, %v282
  %v284 = vpop.f32.mrf.mxu0
  %285 = vmatprep.mubr.bf16.mxu0 0
  %286 = vmatmul.mubr.bf16.gmra.mxu0 %v136
  %v287 = vpop.f32.mrf.mxu0
  %v288 = vadd.f32 %v78, %v287
  %v289 = vpop.f32.mrf.mxu0
  %v290 = vpop.f32.mrf.mxu0
  %v291 = vadd.f32 %v78, %v290
  %v292 = vpop.f32.mrf.mxu0
  %293 = vmatprep.mubr.bf16.mxu0 0
  %294 = vmatmul.mubr.bf16.gmra.mxu0 %v139
  %v295 = vpop.f32.mrf.mxu0
  %v296 = vadd.f32 %v78, %v295
  %v297 = vpop.f32.mrf.mxu0
  %v298 = vpop.f32.mrf.mxu0
  %v299 = vadd.f32 %v78, %v298
  %v300 = vpop.f32.mrf.mxu0
  %301 = vdwg.mxu0
  %v302 = vmax.f32 %v176, 0.0
  %v303 = vmax.f32 %v179, 0.0
  %v304 = vmax.f32 %v184, 0.0
  %v305 = vmax.f32 %v187, 0.0
  %v306 = vmax.f32 %v192, 0.0
  %v307 = vmax.f32 %v195, 0.0
  %v308 = vmax.f32 %v200, 0.0
  %v309 = vmax.f32 %v203, 0.0
  %v310 = vmax.f32 %v208, 0.0
  %v311 = vmax.f32 %v211, 0.0
  %v312 = vmax.f32 %v216, 0.0
  %v313 = vmax.f32 %v219, 0.0
  %v314 = vmax.f32 %v224, 0.0
  %v315 = vmax.f32 %v227, 0.0
  %v316 = vmax.f32 %v232, 0.0
  %v317 = vmax.f32 %v235, 0.0
  %v318 = vmax.f32 %v240, 0.0
  %v319 = vmax.f32 %v243, 0.0
  %v320 = vmax.f32 %v248, 0.0
  %v321 = vmax.f32 %v251, 0.0
  %v322 = vmax.f32 %v256, 0.0
  %v323 = vmax.f32 %v259, 0.0
  %v324 = vmax.f32 %v264, 0.0
  %v325 = vmax.f32 %v267, 0.0
  %v326 = vmax.f32 %v272, 0.0
  %v327 = vmax.f32 %v275, 0.0
  %v328 = vmax.f32 %v280, 0.0
  %v329 = vmax.f32 %v283, 0.0
  %v330 = vmax.f32 %v288, 0.0
  %v331 = vmax.f32 %v291, 0.0
  %v332 = vmax.f32 %v296, 0.0
  %v333 = vmax.f32 %v299, 0.0
  %v334 = vpack.c.bf16 %v303, %v302
  %v335 = vpack.c.bf16 %v305, %v304
  %v336 = vpack.c.bf16 %v307, %v306
  %v337 = vpack.c.bf16 %v309, %v308
  %v338 = vpack.c.bf16 %v311, %v310
  %v339 = vpack.c.bf16 %v313, %v312
  %v340 = vpack.c.bf16 %v315, %v314
  %v341 = vpack.c.bf16 %v317, %v316
  %v342 = vpack.c.bf16 %v319, %v318
  %v343 = vpack.c.bf16 %v321, %v320
  %v344 = vpack.c.bf16 %v323, %v322
  %v345 = vpack.c.bf16 %v325, %v324
  %v346 = vpack.c.bf16 %v327, %v326
  %v347 = vpack.c.bf16 %v329, %v328
  %v348 = vpack.c.bf16 %v331, %v330
  %v349 = vpack.c.bf16 %v333, %v332
  %v350 = vld [vmem:[%s3] sm:$0xf]
  %v351 = vld [vmem:[%s3 + $0x4] sm:$0xf]
  %v352 = vld [vmem:[%s3 + $0x8] sm:$0xf]
  %v353 = vld [vmem:[%s3 + $0xc] sm:$0xf]
  %v354 = vld [vmem:[%s3 + $0x10] sm:$0xf]
  %v355 = vld [vmem:[%s3 + $0x14] sm:$0xf]
  %v356 = vld [vmem:[%s3 + $0x18] sm:$0xf]
  %v357 = vld [vmem:[%s3 + $0x1c] sm:$0xf]
  %v358 = vld [vmem:[%s4] sm:$0x1]
  %v360 = vlaneseq
  %v361 = vshrl.u32 %v360, 7
  %v362 = vsub.s32 0, %v361
  %v363 = vrot.slane %v358, %v362
  %v373 = vunpack.c.l.b16 %v350
  %v374 = vunpack.c.l.b16 %v351
  %v375 = vunpack.c.l.b16 %v352
  %v376 = vunpack.c.l.b16 %v353
  %v377 = vunpack.c.l.b16 %v354
  %v378 = vunpack.c.l.b16 %v355
  %v379 = vunpack.c.l.b16 %v356
  %v380 = vunpack.c.l.b16 %v357
  %v381 = vpack.c.b16 %v374, %v373
  %v382 = vpack.c.b16 %v376, %v375
  %v383 = vpack.c.b16 %v378, %v377
  %v384 = vpack.c.b16 %v380, %v379
  %vm389 = vcmask 523264
  %v391 = vsel %vm389, %v334, 0
  %v394 = vsel %vm389, %v335, 0
  %v397 = vsel %vm389, %v336, 0
  %v400 = vsel %vm389, %v337, 0
  %v403 = vsel %vm389, %v338, 0
  %v406 = vsel %vm389, %v339, 0
  %v409 = vsel %vm389, %v340, 0
  %v412 = vsel %vm389, %v341, 0
  %v415 = vsel %vm389, %v342, 0
  %v418 = vsel %vm389, %v343, 0
  %v421 = vsel %vm389, %v344, 0
  %v424 = vsel %vm389, %v345, 0
  %v427 = vsel %vm389, %v346, 0
  %v430 = vsel %vm389, %v347, 0
  %v433 = vsel %vm389, %v348, 0
  %v436 = vsel %vm389, %v349, 0
  %438 = vmatprep.subr.bf16.mxu0 0
  %439 = vmatpush1.bf16.msra.mxu0 0
  %440 = vmatprep.subr.bf16.mxu0 0
  %441 = vmatpush1.bf16.msra.mxu0 0
  %442 = vmatprep.subr.bf16.mxu0 0
  %443 = vmatpush1.bf16.msra.mxu0 0
  %444 = vmatprep.subr.bf16.mxu0 0
  %445 = vmatpush1.bf16.msra.mxu0 0
  %446 = vmatprep.subr.bf16.mxu0 0
  %447 = vmatpush1.bf16.msra.mxu0 %v384
  %448 = vmatprep.subr.bf16.mxu0 0
  %449 = vmatpush1.bf16.msra.mxu0 %v383
  %450 = vmatprep.subr.bf16.mxu0 0
  %451 = vmatpush1.bf16.msra.mxu0 %v382
  %452 = vmatprep.subr.bf16.mxu0 0
  %453 = vmatpush1.bf16.msra.mxu0 %v381
  %454 = vmatprep.subr.bf16.mxu0 0
  %455 = vmatpush2.bf16.msra.mxu0 0
  %456 = vmatprep.subr.bf16.mxu0 0
  %457 = vmatpush2.bf16.msra.mxu0 0
  %458 = vmatprep.subr.bf16.mxu0 0
  %459 = vmatpush2.bf16.msra.mxu0 0
  %460 = vmatprep.subr.bf16.mxu0 0
  %461 = vmatpush2.bf16.msra.mxu0 0
  %462 = vmatprep.subr.bf16.mxu0 0
  %463 = vmatpush2.bf16.msra.mxu0 0
  %464 = vmatprep.subr.bf16.mxu0 0
  %465 = vmatpush2.bf16.msra.mxu0 0
  %466 = vmatprep.subr.bf16.mxu0 0
  %467 = vmatpush2.bf16.msra.mxu0 0
  %468 = vmatprep.subr.bf16.mxu0 0
  %469 = vmatpush2.bf16.msra.mxu0 0
  %470 = vmatprep.mubr.bf16.mxu0 0
  %471 = vmatmul.mubr.bf16.gmra.mxu0 %v391
  %v472 = vpop.f32.mrf.mxu0
  %v473 = vadd.f32 %v363, %v472
  %v474 = vpop.f32.mrf.mxu0
  %v475 = vpop.f32.mrf.mxu0
  %v476 = vadd.f32 %v363, %v475
  %v477 = vpop.f32.mrf.mxu0
  %478 = vmatprep.mubr.bf16.mxu0 0
  %479 = vmatmul.mubr.bf16.gmra.mxu0 %v394
  %v480 = vpop.f32.mrf.mxu0
  %v481 = vadd.f32 %v363, %v480
  %v482 = vpop.f32.mrf.mxu0
  %v483 = vpop.f32.mrf.mxu0
  %v484 = vadd.f32 %v363, %v483
  %v485 = vpop.f32.mrf.mxu0
  %486 = vmatprep.mubr.bf16.mxu0 0
  %487 = vmatmul.mubr.bf16.gmra.mxu0 %v397
  %v488 = vpop.f32.mrf.mxu0
  %v489 = vadd.f32 %v363, %v488
  %v490 = vpop.f32.mrf.mxu0
  %v491 = vpop.f32.mrf.mxu0
  %v492 = vadd.f32 %v363, %v491
  %v493 = vpop.f32.mrf.mxu0
  %494 = vmatprep.mubr.bf16.mxu0 0
  %495 = vmatmul.mubr.bf16.gmra.mxu0 %v400
  %v496 = vpop.f32.mrf.mxu0
  %v497 = vadd.f32 %v363, %v496
  %v498 = vpop.f32.mrf.mxu0
  %v499 = vpop.f32.mrf.mxu0
  %v500 = vadd.f32 %v363, %v499
  %v501 = vpop.f32.mrf.mxu0
  %502 = vmatprep.mubr.bf16.mxu0 0
  %503 = vmatmul.mubr.bf16.gmra.mxu0 %v403
  %v504 = vpop.f32.mrf.mxu0
  %v505 = vadd.f32 %v363, %v504
  %v506 = vpop.f32.mrf.mxu0
  %v507 = vpop.f32.mrf.mxu0
  %v508 = vadd.f32 %v363, %v507
  %v509 = vpop.f32.mrf.mxu0
  %510 = vmatprep.mubr.bf16.mxu0 0
  %511 = vmatmul.mubr.bf16.gmra.mxu0 %v406
  %v512 = vpop.f32.mrf.mxu0
  %v513 = vadd.f32 %v363, %v512
  %v514 = vpop.f32.mrf.mxu0
  %v515 = vpop.f32.mrf.mxu0
  %v516 = vadd.f32 %v363, %v515
  %v517 = vpop.f32.mrf.mxu0
  %518 = vmatprep.mubr.bf16.mxu0 0
  %519 = vmatmul.mubr.bf16.gmra.mxu0 %v409
  %v520 = vpop.f32.mrf.mxu0
  %v521 = vadd.f32 %v363, %v520
  %v522 = vpop.f32.mrf.mxu0
  %v523 = vpop.f32.mrf.mxu0
  %v524 = vadd.f32 %v363, %v523
  %v525 = vpop.f32.mrf.mxu0
  %526 = vmatprep.mubr.bf16.mxu0 0
  %527 = vmatmul.mubr.bf16.gmra.mxu0 %v412
  %v528 = vpop.f32.mrf.mxu0
  %v529 = vadd.f32 %v363, %v528
  %v530 = vpop.f32.mrf.mxu0
  %v531 = vpop.f32.mrf.mxu0
  %v532 = vadd.f32 %v363, %v531
  %v533 = vpop.f32.mrf.mxu0
  %534 = vmatprep.mubr.bf16.mxu0 0
  %535 = vmatmul.mubr.bf16.gmra.mxu0 %v415
  %v536 = vpop.f32.mrf.mxu0
  %v537 = vadd.f32 %v363, %v536
  %v538 = vpop.f32.mrf.mxu0
  %v539 = vpop.f32.mrf.mxu0
  %v540 = vadd.f32 %v363, %v539
  %v541 = vpop.f32.mrf.mxu0
  %542 = vmatprep.mubr.bf16.mxu0 0
  %543 = vmatmul.mubr.bf16.gmra.mxu0 %v418
  %v544 = vpop.f32.mrf.mxu0
  %v545 = vadd.f32 %v363, %v544
  %v546 = vpop.f32.mrf.mxu0
  %v547 = vpop.f32.mrf.mxu0
  %v548 = vadd.f32 %v363, %v547
  %v549 = vpop.f32.mrf.mxu0
  %550 = vmatprep.mubr.bf16.mxu0 0
  %551 = vmatmul.mubr.bf16.gmra.mxu0 %v421
  %v552 = vpop.f32.mrf.mxu0
  %v553 = vadd.f32 %v363, %v552
  %v554 = vpop.f32.mrf.mxu0
  %v555 = vpop.f32.mrf.mxu0
  %v556 = vadd.f32 %v363, %v555
  %v557 = vpop.f32.mrf.mxu0
  %558 = vmatprep.mubr.bf16.mxu0 0
  %559 = vmatmul.mubr.bf16.gmra.mxu0 %v424
  %v560 = vpop.f32.mrf.mxu0
  %v561 = vadd.f32 %v363, %v560
  %v562 = vpop.f32.mrf.mxu0
  %v563 = vpop.f32.mrf.mxu0
  %v564 = vadd.f32 %v363, %v563
  %v565 = vpop.f32.mrf.mxu0
  %566 = vmatprep.mubr.bf16.mxu0 0
  %567 = vmatmul.mubr.bf16.gmra.mxu0 %v427
  %v568 = vpop.f32.mrf.mxu0
  %v569 = vadd.f32 %v363, %v568
  %v570 = vpop.f32.mrf.mxu0
  %v571 = vpop.f32.mrf.mxu0
  %v572 = vadd.f32 %v363, %v571
  %v573 = vpop.f32.mrf.mxu0
  %574 = vmatprep.mubr.bf16.mxu0 0
  %575 = vmatmul.mubr.bf16.gmra.mxu0 %v430
  %v576 = vpop.f32.mrf.mxu0
  %v577 = vadd.f32 %v363, %v576
  %v578 = vpop.f32.mrf.mxu0
  %v579 = vpop.f32.mrf.mxu0
  %v580 = vadd.f32 %v363, %v579
  %v581 = vpop.f32.mrf.mxu0
  %582 = vmatprep.mubr.bf16.mxu0 0
  %583 = vmatmul.mubr.bf16.gmra.mxu0 %v433
  %v584 = vpop.f32.mrf.mxu0
  %v585 = vadd.f32 %v363, %v584
  %v586 = vpop.f32.mrf.mxu0
  %v587 = vpop.f32.mrf.mxu0
  %v588 = vadd.f32 %v363, %v587
  %v589 = vpop.f32.mrf.mxu0
  %590 = vmatprep.mubr.bf16.mxu0 0
  %591 = vmatmul.mubr.bf16.gmra.mxu0 %v436
  %v592 = vpop.f32.mrf.mxu0
  %v593 = vadd.f32 %v363, %v592
  %v594 = vpop.f32.mrf.mxu0
  %v595 = vpop.f32.mrf.mxu0
  %v596 = vadd.f32 %v363, %v595
  %v597 = vpop.f32.mrf.mxu0
  %598 = vdwg.mxu0
  %599 = vst.msk [vmem:[%s5] sm:$0xff] %vm92, %v473
  %600 = vst.msk [vmem:[%s5 + $0x8] sm:$0xff] %vm92, %v476
  %601 = vst.msk [vmem:[%s5 + $0x10] sm:$0xff] %vm92, %v481
  %602 = vst.msk [vmem:[%s5 + $0x18] sm:$0xff] %vm92, %v484
  %603 = vst.msk [vmem:[%s5 + $0x20] sm:$0xff] %vm92, %v489
  %604 = vst.msk [vmem:[%s5 + $0x28] sm:$0xff] %vm92, %v492
  %605 = vst.msk [vmem:[%s5 + $0x30] sm:$0xff] %vm92, %v497
  %606 = vst.msk [vmem:[%s5 + $0x38] sm:$0xff] %vm92, %v500
  %607 = vst.msk [vmem:[%s5 + $0x40] sm:$0xff] %vm92, %v505
  %608 = vst.msk [vmem:[%s5 + $0x48] sm:$0xff] %vm92, %v508
  %609 = vst.msk [vmem:[%s5 + $0x50] sm:$0xff] %vm92, %v513
  %610 = vst.msk [vmem:[%s5 + $0x58] sm:$0xff] %vm92, %v516
  %611 = vst.msk [vmem:[%s5 + $0x60] sm:$0xff] %vm92, %v521
  %612 = vst.msk [vmem:[%s5 + $0x68] sm:$0xff] %vm92, %v524
  %613 = vst.msk [vmem:[%s5 + $0x70] sm:$0xff] %vm92, %v529
  %614 = vst.msk [vmem:[%s5 + $0x78] sm:$0xff] %vm92, %v532
  %615 = vst.msk [vmem:[%s5 + $0x80] sm:$0xff] %vm92, %v537
  %616 = vst.msk [vmem:[%s5 + $0x88] sm:$0xff] %vm92, %v540
  %617 = vst.msk [vmem:[%s5 + $0x90] sm:$0xff] %vm92, %v545
  %618 = vst.msk [vmem:[%s5 + $0x98] sm:$0xff] %vm92, %v548
  %619 = vst.msk [vmem:[%s5 + $0xa0] sm:$0xff] %vm92, %v553
  %620 = vst.msk [vmem:[%s5 + $0xa8] sm:$0xff] %vm92, %v556
  %621 = vst.msk [vmem:[%s5 + $0xb0] sm:$0xff] %vm92, %v561
  %622 = vst.msk [vmem:[%s5 + $0xb8] sm:$0xff] %vm92, %v564
  %623 = vst.msk [vmem:[%s5 + $0xc0] sm:$0xff] %vm92, %v569
  %624 = vst.msk [vmem:[%s5 + $0xc8] sm:$0xff] %vm92, %v572
  %625 = vst.msk [vmem:[%s5 + $0xd0] sm:$0xff] %vm92, %v577
  %626 = vst.msk [vmem:[%s5 + $0xd8] sm:$0xff] %vm92, %v580
  %627 = vst.msk [vmem:[%s5 + $0xe0] sm:$0xff] %vm92, %v585
  %628 = vst.msk [vmem:[%s5 + $0xe8] sm:$0xff] %vm92, %v588
  %629 = vst.msk [vmem:[%s5 + $0xf0] sm:$0xff] %vm92, %v593
  %630 = vst.msk [vmem:[%s5 + $0xf8] sm:$0xff] %vm92, %v596
  // Predicated region
  $region22: #{_mlp_decoder_pallas.1} parent=0 // pred_check
    _
  $region23: #{_mlp_decoder_pallas.1} parent=0 // pred_check_branch
    %632 = sbr.rel (0) target = $region25
  $region24: #{_mlp_decoder_pallas.1} parent=0 // pred_region
    _
  $region25: #{_mlp_decoder_pallas.1} parent=0 // pred_fallthru
    _
  // Predicated region
  $region26: #{_mlp_decoder_pallas.1} parent=0 // pred_check
    _
  $region27: #{_mlp_decoder_pallas.1} parent=0 // pred_check_branch
    %634 = sbr.rel (0) target = $region29
  $region28: #{_mlp_decoder_pallas.1} parent=0 // pred_region
    _
  $region29: #{_mlp_decoder_pallas.1} parent=0 // pred_fallthru
    _

</llo_original>
